<compile_context>
chip_gen: v6e
topology: v6e:2x2x1
jax: 0.10.0
libtpu: 0.0.40
codegen_flags: <defaults>
</compile_context>

<pallas_src>
import functools

import jax
import jax.numpy as jnp
from jax import lax
from jax.experimental import pallas as pl
from jax.experimental.pallas import tpu as pltpu


# ----------------------------------------------------------------------------
# Generation-aware VMEM sizing
# ----------------------------------------------------------------------------
def _vmem_limits():
    """(vmem_limit_bytes, streaming_tile_budget_bytes), derived from the chip."""
    cap = 64 * 1024 * 1024  # conservative fallback == v7x physical VMEM
    try:
        cap = int(pltpu.get_tpu_info().vmem_capacity_bytes)
    except Exception:
        pass
    cap = max(cap, 32 * 1024 * 1024)
    vmem_limit = min((cap * 3) // 4, 100 * 1024 * 1024)   # 96 MiB on v5e/v6e, 48 MiB on v7x
    tile_budget = cap // 4                                 # 32 MiB on v5e/v6e, 16 MiB on v7x
    return vmem_limit, tile_budget


def _divisor_tiles(n, cands):
    out = [c for c in cands if c <= n and n % c == 0]
    return out or [n]   # fallback: full extent (always a legal block along that axis)


def _choose_encode_tiles(B, L, H, budget):
    """Pick (TB, TL): large TB first, shrink TL toward 128 before shrinking TB."""
    tb_cands = _divisor_tiles(B, (512, 384, 256, 128, 64, 32, 16))   # multiples of 16 (bf16 sublane pack)
    tl_cands = _divisor_tiles(L, (2048, 1024, 512, 256, 128))
    def fits(tb, tl):
        # double-buffered bf16 hidden tile + f32 mask tile
        return 2 * tb * tl * H * 2 + 2 * tb * tl * 4 <= budget
    for prefer_split in (True, False):        # keep >=2 batch blocks when possible (v7x megacore)
        for tb in tb_cands:
            if prefer_split and tb == B and B > min(tb_cands):
                continue
            for tl in tl_cands:
                if fits(tb, tl):
                    return tb, tl
    return min(tb_cands), min(tl_cands)


def _choose_score_tiles(Bq, Bp, D, budget):
    """Maximize TQ first (p refetch bytes ∝ Bq/TQ), then TP."""
    tq_cands = _divisor_tiles(Bq, (1024, 512, 384, 256, 128, 64, 32, 16))
    tp_cands = _divisor_tiles(Bp, (2048, 1024, 512, 256, 128))
    def fits(tq, tp):
        need = (2 * tq * D * 2      # q bf16, double-buffered
                + tq * D * 2        # hoisted scaled-q scratch (bf16)
                + 2 * D * tp * 2    # p_t bf16, double-buffered
                + 2 * tq * tp * 4   # scores tile, double-buffered
                + tq * 4 * 4)       # row scratches / row_loss
        return need <= budget
    for prefer_split in (True, False):        # keep >=2 qi blocks when possible (v7x megacore)
        for tq in tq_cands:
            if prefer_split and tq == Bq and Bq > min(tq_cands):
                continue
            for tp in tp_cands:
                if fits(tq, tp):
                    return tq, tp
    return min(tq_cands), min(tp_cands)


# ----------------------------------------------------------------------------
# Kernel 1: encode — masked mean-pool (tiled over seq) + projection + L2 norm
# ----------------------------------------------------------------------------
def _encode_kernel(hidden_ref, mask_ref, w_ref, out_ref, pool_acc, denom_acc):
    l = pl.program_id(1)

    @pl.when(l == 0)
    def _():
        pool_acc[...] = jnp.zeros_like(pool_acc)
        denom_acc[...] = jnp.zeros_like(denom_acc)

    hidden = hidden_ref[...].astype(jnp.float32)          # (TB, TL, H) bf16 streamed, f32 accumulation
    mask = mask_ref[...]                                   # (TB, TL) f32
    pool_acc[...] += jnp.sum(hidden * mask[:, :, None], axis=1)       # (TB, H)
    denom_acc[...] += jnp.sum(mask, axis=1, keepdims=True)            # (TB, 1)

    @pl.when(l == pl.num_programs(1) - 1)
    def _():
        denom = jnp.maximum(denom_acc[...], 1.0)          # guard fully-padded rows
        pooled = (pool_acc[...] / denom).astype(jnp.bfloat16)
        reps = jnp.dot(pooled, w_ref[...],
                       preferred_element_type=jnp.float32)            # bf16 MXU, f32 acc
        sumsq = jnp.sum(reps * reps, axis=-1, keepdims=True)
        out_ref[...] = (reps * lax.rsqrt(sumsq + 1e-12)).astype(out_ref.dtype)


def encode(hidden_states, attention_mask, proj_w_bf16):
    """hidden_states: (B, L, H); attention_mask: (B, L); proj_w_bf16: (H, D) -> (B, D) bf16."""
    B, L, H = hidden_states.shape
    D = proj_w_bf16.shape[1]

    # Mask-aware pad of a long, ragged seq axis so the streaming tile never
    # degenerates to the (possibly huge) full L.  Zero mask => semantics preserved.
    if L > 128 and L % 128 != 0:
        pad = 128 - (L % 128)
        hidden_states = jnp.pad(hidden_states, ((0, 0), (0, pad), (0, 0)))
        attention_mask = jnp.pad(attention_mask, ((0, 0), (0, pad)))
        L += pad
    # TODO(synk): a huge batch dim that no tile candidate divides falls back to a
    # full-B block; callers with ragged batch sizes should pad B themselves.

    hidden_bf16 = hidden_states.astype(jnp.bfloat16)       # bf16 at the HBM boundary
    mask_f32 = attention_mask.astype(jnp.float32)

    vmem_limit, tile_budget = _vmem_limits()
    TB, TL = _choose_encode_tiles(B, L, H, tile_budget)
    grid = (B // TB, L // TL)
    return pl.pallas_call(
        _encode_kernel,
        out_shape=jax.ShapeDtypeStruct((B, D), jnp.bfloat16),
        grid_spec=pltpu.PrefetchScalarGridSpec(
            num_scalar_prefetch=0,
            grid=grid,
            in_specs=[
                pl.BlockSpec((TB, TL, H), lambda b, l: (b, l, 0)),
                pl.BlockSpec((TB, TL), lambda b, l: (b, l)),
                pl.BlockSpec((H, D), lambda b, l: (0, 0)),   # bf16 weight stays resident
            ],
            out_specs=pl.BlockSpec((TB, D), lambda b, l: (b, 0)),
            scratch_shapes=[
                pltpu.VMEM((TB, H), jnp.float32),            # pooled-sum accumulator
                pltpu.VMEM((TB, 1), jnp.float32),            # mask-count accumulator
            ],
        ),
        compiler_params=pltpu.CompilerParams(
            dimension_semantics=("parallel", "arbitrary"),
            vmem_limit_bytes=vmem_limit,
        ),
    )(hidden_bf16, mask_f32, proj_w_bf16)


# ----------------------------------------------------------------------------
# Kernel 2: fused compute_score + per-row cross-entropy (online softmax)
# ----------------------------------------------------------------------------
def _score_loss_kernel(q_ref, p_ref, *refs, inv_temp, group_size, emit_scores):
    if emit_scores:
        scores_ref, row_loss_ref, qs_scr, m_scr, l_scr, t_scr = refs
    else:
        scores_ref = None
        row_loss_ref, qs_scr, m_scr, l_scr, t_scr = refs

    qi = pl.program_id(0)
    pj = pl.program_id(1)

    @pl.when(pj == 0)
    def _():
        # Hoist 1/temperature scale + bf16 cast out of the pj loop: q is resident across pj.
        qs_scr[...] = (q_ref[...].astype(jnp.float32) * inv_temp).astype(jnp.bfloat16)
        m_scr[...] = jnp.full(m_scr.shape, -jnp.inf, jnp.float32)
        l_scr[...] = jnp.zeros_like(l_scr)
        t_scr[...] = jnp.zeros_like(t_scr)

    # (TQ, D) @ (D, TP): MXU-native form (p_reps transposed once in JAX, not per step).
    s = jnp.dot(qs_scr[...], p_ref[...], preferred_element_type=jnp.float32)   # (TQ, TP)
    if emit_scores:
        scores_ref[...] = s

    TQ, TP = s.shape
    row = lax.broadcasted_iota(jnp.int32, (TQ, TP), 0)
    col = lax.broadcasted_iota(jnp.int32, (TQ, TP), 1)
    # target column of global row r is r * group_size
    hit = (col + pj * TP) == ((row + qi * TQ) * group_size)
    t_scr[...] += jnp.sum(jnp.where(hit, s, 0.0), axis=-1, keepdims=True)       # target logit

    m_prev = m_scr[...]
    m_new = jnp.maximum(m_prev, jnp.max(s, axis=-1, keepdims=True))
    l_scr[...] = (l_scr[...] * jnp.exp(m_prev - m_new)
                  + jnp.sum(jnp.exp(s - m_new), axis=-1, keepdims=True))
    m_scr[...] = m_new

    @pl.when(pj == pl.num_programs(1) - 1)
    def _():
        # per-row CE: logsumexp(scores_row) - scores_row[target]
        row_loss_ref[...] = jnp.log(l_scr[...]) + m_scr[...] - t_scr[...]


def compute_scores_and_row_loss(q_reps, p_reps, temperature, return_scores=True):
    Bq, D = q_reps.shape
    Bp, _ = p_reps.shape
    assert Bp % Bq == 0, "number of passages must be a multiple of number of queries"
    group_size = Bp // Bq

    vmem_limit, tile_budget = _vmem_limits()
    TQ, TP = _choose_score_tiles(Bq, Bp, D, tile_budget)
    grid = (Bq // TQ, Bp // TP)

    # One tiny (Bp, D) relayout in JAX so the kernel never re-transposes p per step.
    p_t = jnp.transpose(p_reps.astype(jnp.bfloat16))          # (D, Bp)
    q_bf16 = q_reps.astype(jnp.bfloat16)

    kernel = functools.partial(_score_loss_kernel,
                               inv_temp=float(1.0 / temperature),
                               group_size=group_size,
                               emit_scores=return_scores)

    if return_scores:
        out_shape = (jax.ShapeDtypeStruct((Bq, Bp), jnp.float32),
                     jax.ShapeDtypeStruct((Bq, 1), jnp.float32))
        out_specs = (pl.BlockSpec((TQ, TP), lambda qi, pj: (qi, pj)),   # lane-dense score tiles
                     pl.BlockSpec((TQ, 1), lambda qi, pj: (qi, 0)))     # resident across pj
    else:
        out_shape = jax.ShapeDtypeStruct((Bq, 1), jnp.float32)
        out_specs = pl.BlockSpec((TQ, 1), lambda qi, pj: (qi, 0))

    out = pl.pallas_call(
        kernel,
        out_shape=out_shape,
        grid_spec=pltpu.PrefetchScalarGridSpec(
            num_scalar_prefetch=0,
            grid=grid,
            in_specs=[
                pl.BlockSpec((TQ, D), lambda qi, pj: (qi, 0)),
                pl.BlockSpec((D, TP), lambda qi, pj: (0, pj)),
            ],
            out_specs=out_specs,
            scratch_shapes=[
                pltpu.VMEM((TQ, D), jnp.bfloat16),   # hoisted (q * 1/temperature) in bf16
                pltpu.VMEM((TQ, 1), jnp.float32),    # running max
                pltpu.VMEM((TQ, 1), jnp.float32),    # running exp-sum
                pltpu.VMEM((TQ, 1), jnp.float32),    # target logit
            ],
        ),
        compiler_params=pltpu.CompilerParams(
            dimension_semantics=("parallel", "arbitrary"),
            vmem_limit_bytes=vmem_limit,
        ),
    )(q_bf16, p_t)

    if return_scores:
        scores, row_loss = out
    else:
        scores, row_loss = None, out
    return scores, row_loss


# ----------------------------------------------------------------------------
# Model wrapper mirroring AbsEmbedderModel.forward (training, in-batch negs)
# ----------------------------------------------------------------------------
class EmbedderModelPallas:
    def __init__(self, proj_w, temperature=1.0, return_scores=True):
        self.proj_w = jnp.asarray(proj_w).astype(jnp.bfloat16)   # weights streamed in bf16
        self.temperature = float(temperature)
        self.return_scores = return_scores
        # TODO(synk): negatives_cross_device (_dist_gather_tensor), teacher-score
        # distillation (kl_div / m3_kd_loss), and sub_batch_size encoding are not
        # implemented in this kernelized forward.

    def forward(self, queries, passages):
        qh, qm = queries["hidden_states"], queries["attention_mask"]
        ph, pm = passages["hidden_states"], passages["attention_mask"]
        # Two pallas_calls (no concatenated copy of all hidden states): encode is
        # HBM-bandwidth bound, the concat cost far exceeded the saved weight DMA.
        q_reps = encode(qh, qm, self.proj_w)
        p_reps = encode(ph, pm, self.proj_w)
        scores, row_loss = compute_scores_and_row_loss(
            q_reps, p_reps, self.temperature, return_scores=self.return_scores)
        loss = jnp.mean(row_loss)   # tiny (Bq,)-sized reduction, done in plain JAX
        return {"q_reps": q_reps, "p_reps": p_reps, "scores": scores, "loss": loss}


# ----------------------------------------------------------------------------
# Reference (pure JAX) for a correctness check — mirrors the bf16 HBM boundaries
# ----------------------------------------------------------------------------
def _ref_forward(queries, passages, proj_w, temperature):
    w = proj_w.astype(jnp.bfloat16)

    def enc(h, m):
        m = m.astype(jnp.float32)
        h = h.astype(jnp.bfloat16).astype(jnp.float32)
        denom = jnp.maximum(jnp.sum(m, axis=1, keepdims=True), 1.0)
        pooled = jnp.sum(h * m[:, :, None], axis=1) / denom
        reps = jnp.dot(pooled.astype(jnp.bfloat16), w, preferred_element_type=jnp.float32)
        reps = reps * lax.rsqrt(jnp.sum(reps * reps, axis=-1, keepdims=True) + 1e-12)
        return reps.astype(jnp.bfloat16)

    q = enc(queries["hidden_states"], queries["attention_mask"])
    p = enc(passages["hidden_states"], passages["attention_mask"])
    qs = (q.astype(jnp.float32) * (1.0 / temperature)).astype(jnp.bfloat16)
    scores = jnp.dot(qs, p.T, preferred_element_type=jnp.float32)
    Bq, Bp = scores.shape
    targets = jnp.arange(Bq) * (Bp // Bq)
    logp = jax.nn.log_softmax(scores, axis=-1)
    loss = -jnp.mean(logp[jnp.arange(Bq), targets])
    return scores, loss


if __name__ == "__main__":
    key = jax.random.PRNGKey(0)
    Bq, group_size, L, H, D = 2, 4, 8, 32, 32
    Bp = Bq * group_size
    temperature = 0.02

    k1, k2, k3 = jax.random.split(key, 3)
    q_hidden = jax.random.normal(k1, (Bq, L, H), dtype=jnp.float32)
    p_hidden = jax.random.normal(k2, (Bp, L, H), dtype=jnp.float32)
    # attention masks with a couple of padded positions
    q_mask = jnp.concatenate(
        [jnp.ones((Bq, L - 2), jnp.float32), jnp.zeros((Bq, 2), jnp.float32)], axis=1)
    p_mask = jnp.concatenate(
        [jnp.ones((Bp, L - 1), jnp.float32), jnp.zeros((Bp, 1), jnp.float32)], axis=1)
    proj_w = jax.random.normal(k3, (H, D), dtype=jnp.float32) * 0.05

    model = EmbedderModelPallas(proj_w, temperature=temperature, return_scores=True)
    queries = {"hidden_states": q_hidden, "attention_mask": q_mask}
    passages = {"hidden_states": p_hidden, "attention_mask": p_mask}

    out = model.forward(queries, passages)
    jax.block_until_ready(out["loss"])

    ref_scores, ref_loss = _ref_forward(queries, passages, proj_w, temperature)
    assert jnp.allclose(out["scores"], ref_scores, atol=5e-2, rtol=5e-2), (
        "score mismatch, max abs diff = "
        + str(float(jnp.max(jnp.abs(out["scores"] - ref_scores)))))
    assert jnp.allclose(out["loss"], ref_loss, atol=5e-2, rtol=5e-2), (
        "loss mismatch: " + str(float(out["loss"])) + " vs " + str(float(ref_loss)))

    print("KERNEL_OK")
</pallas_src>

<mosaic_0001>
module attributes {stable_mosaic.version = 11 : i64} {
  func.func @_encode_kernel(%arg0: i32, %arg1: i32, %arg2: memref<2x8x32xbf16, #tpu.memory_space<vmem>>, %arg3: memref<2x8xf32, #tpu.memory_space<vmem>>, %arg4: memref<32x32xbf16, #tpu.memory_space<vmem>>, %arg5: memref<2x32xbf16, #tpu.memory_space<vmem>>, %arg6: memref<2x32xf32, #tpu.memory_space<vmem>>, %arg7: memref<2x1xf32, #tpu.memory_space<vmem>>) attributes {dimension_semantics = [#tpu.dimension_semantics<parallel>, #tpu.dimension_semantics<arbitrary>], iteration_bounds = array<i64: 1, 1>, scalar_prefetch = 0 : i64, scratch_operands = 2 : i64, tpu.core_type = #tpu.core_type<tc>, window_params = [{transform_indices = @transform_0, window_bounds = array<i64: 2, 8, 32>}, {transform_indices = @transform_1, window_bounds = array<i64: 2, 8>}, {pipeline_mode = #tpu.pipeline_mode<synchronous>, transform_indices = @transform_2, window_bounds = array<i64: 32, 32>}, {transform_indices = @transform_3, window_bounds = array<i64: 2, 32>}]} {
    %c0_i32 = arith.constant 0 : i32
    %0 = arith.cmpi eq, %arg1, %c0_i32 : i32
    %1 = arith.extui %0 : i1 to i32
    %c0_i32_0 = arith.constant 0 : i32
    %2 = arith.cmpi ne, %1, %c0_i32_0 : i32
    scf.if %2 {
      %cst_16 = arith.constant 0.000000e+00 : f32
      %21 = vector.broadcast %cst_16 : f32 to vector<2x32xf32>
      %c0_17 = arith.constant 0 : index
      %c0_18 = arith.constant 0 : index
      %22 = vector.load %arg6[%c0_17, %c0_18] : memref<2x32xf32, #tpu.memory_space<vmem>>, vector<2x32xf32>
      tpu.vector_store %arg6[%c0_17, %c0_18], %21 {strides = array<i32>} : memref<2x32xf32, #tpu.memory_space<vmem>>, vector<2x32xf32>,
      %cst_19 = arith.constant 0.000000e+00 : f32
      %23 = vector.broadcast %cst_19 : f32 to vector<2x1xf32>
      %c0_20 = arith.constant 0 : index
      %c0_21 = arith.constant 0 : index
      %24 = vector.load %arg7[%c0_20, %c0_21] : memref<2x1xf32, #tpu.memory_space<vmem>>, vector<2x1xf32>
      tpu.vector_store %arg7[%c0_20, %c0_21], %23 {strides = array<i32>} : memref<2x1xf32, #tpu.memory_space<vmem>>, vector<2x1xf32>,
    } else {
    }
    %c0 = arith.constant 0 : index
    %c0_1 = arith.constant 0 : index
    %c0_2 = arith.constant 0 : index
    %3 = vector.load %arg2[%c0, %c0_1, %c0_2] : memref<2x8x32xbf16, #tpu.memory_space<vmem>>, vector<2x8x32xbf16>
    %4 = arith.extf %3 : vector<2x8x32xbf16> to vector<2x8x32xf32>
    %c0_3 = arith.constant 0 : index
    %c0_4 = arith.constant 0 : index
    %5 = vector.load %arg3[%c0_3, %c0_4] : memref<2x8xf32, #tpu.memory_space<vmem>>, vector<2x8xf32>
    %c0_5 = arith.constant 0 : index
    %c0_6 = arith.constant 0 : index
    %6 = vector.load %arg6[%c0_5, %c0_6] : memref<2x32xf32, #tpu.memory_space<vmem>>, vector<2x32xf32>
    %7 = vector.shape_cast %5 : vector<2x8xf32> to vector<2x8x1xf32>
    %8 = vector.broadcast %7 : vector<2x8x1xf32> to vector<2x8x32xf32>
    %9 = arith.mulf %4, %8 : vector<2x8x32xf32>
    %cst = arith.constant dense<0.000000e+00> : vector<2x32xf32>
    %10 = vector.multi_reduction <add>, %9, %cst [1] : vector<2x8x32xf32> to vector<2x32xf32>
    %11 = arith.addf %6, %10 : vector<2x32xf32>
    %c0_7 = arith.constant 0 : index
    %c0_8 = arith.constant 0 : index
    %12 = vector.load %arg6[%c0_7, %c0_8] : memref<2x32xf32, #tpu.memory_space<vmem>>, vector<2x32xf32>
    tpu.vector_store %arg6[%c0_7, %c0_8], %11 {strides = array<i32>} : memref<2x32xf32, #tpu.memory_space<vmem>>, vector<2x32xf32>,
    %c0_9 = arith.constant 0 : index
    %c0_10 = arith.constant 0 : index
    %13 = vector.load %arg7[%c0_9, %c0_10] : memref<2x1xf32, #tpu.memory_space<vmem>>, vector<2x1xf32>
    %cst_11 = arith.constant dense<0.000000e+00> : vector<2xf32>
    %14 = vector.multi_reduction <add>, %5, %cst_11 [1] : vector<2x8xf32> to vector<2xf32>
    %15 = vector.shape_cast %14 : vector<2xf32> to vector<2x1xf32>
    %16 = arith.addf %13, %15 : vector<2x1xf32>
    %c0_12 = arith.constant 0 : index
    %c0_13 = arith.constant 0 : index
    %17 = vector.load %arg7[%c0_12, %c0_13] : memref<2x1xf32, #tpu.memory_space<vmem>>, vector<2x1xf32>
    tpu.vector_store %arg7[%c0_12, %c0_13], %16 {strides = array<i32>} : memref<2x1xf32, #tpu.memory_space<vmem>>, vector<2x1xf32>,
    %c0_i32_14 = arith.constant 0 : i32
    %18 = arith.cmpi eq, %arg1, %c0_i32_14 : i32
    %19 = arith.extui %18 : i1 to i32
    %c0_i32_15 = arith.constant 0 : i32
    %20 = arith.cmpi ne, %19, %c0_i32_15 : i32
    scf.if %20 {
      %c0_16 = arith.constant 0 : index
      %c0_17 = arith.constant 0 : index
      %21 = vector.load %arg7[%c0_16, %c0_17] : memref<2x1xf32, #tpu.memory_space<vmem>>, vector<2x1xf32>
      %cst_18 = arith.constant 1.000000e+00 : f32
      %22 = vector.broadcast %cst_18 : f32 to vector<2x1xf32>
      %23 = arith.maximumf %21, %22 : vector<2x1xf32>
      %c0_19 = arith.constant 0 : index
      %c0_20 = arith.constant 0 : index
      %24 = vector.load %arg6[%c0_19, %c0_20] : memref<2x32xf32, #tpu.memory_space<vmem>>, vector<2x32xf32>
      %25 = vector.broadcast %23 : vector<2x1xf32> to vector<2x32xf32>
      %26 = arith.divf %24, %25 : vector<2x32xf32>
      %27 = arith.truncf %26 : vector<2x32xf32> to vector<2x32xbf16>
      %c0_21 = arith.constant 0 : index
      %c0_22 = arith.constant 0 : index
      %28 = vector.load %arg4[%c0_21, %c0_22] : memref<32x32xbf16, #tpu.memory_space<vmem>>, vector<32x32xbf16>
      %cst_23 = arith.constant dense<0.000000e+00> : vector<2x32xf32>
      %29 = tpu.matmul %27, %28, %cst_23 {dimension_numbers = #tpu.dot_dimension_numbers<[1], [0], [0], [1], [0, 0, 1, 1], [], []>} : vector<2x32xbf16>, vector<32x32xbf16>, vector<2x32xf32> -> vector<2x32xf32>
      %30 = arith.mulf %29, %29 : vector<2x32xf32>
      %cst_24 = arith.constant dense<0.000000e+00> : vector<2xf32>
      %31 = vector.multi_reduction <add>, %30, %cst_24 [1] : vector<2x32xf32> to vector<2xf32>
      %32 = vector.shape_cast %31 : vector<2xf32> to vector<2x1xf32>
      %cst_25 = arith.constant 9.99999996E-13 : f32
      %33 = vector.broadcast %cst_25 : f32 to vector<2x1xf32>
      %34 = arith.addf %32, %33 : vector<2x1xf32>
      %35 = math.rsqrt %34 : vector<2x1xf32>
      %36 = vector.broadcast %35 : vector<2x1xf32> to vector<2x32xf32>
      %37 = arith.mulf %29, %36 : vector<2x32xf32>
      %38 = arith.truncf %37 : vector<2x32xf32> to vector<2x32xbf16>
      %c0_26 = arith.constant 0 : index
      %c0_27 = arith.constant 0 : index
      %39 = vector.load %arg5[%c0_26, %c0_27] : memref<2x32xbf16, #tpu.memory_space<vmem>>, vector<2x32xbf16>
      tpu.vector_store %arg5[%c0_26, %c0_27], %38 {strides = array<i32>} : memref<2x32xbf16, #tpu.memory_space<vmem>>, vector<2x32xbf16>,
    } else {
    }
    return
  }
  func.func @transform_0(%arg0: i32, %arg1: i32) -> (i32, i32, i32) {
    %c0_i32 = arith.constant 0 : i32
    %c0_i32_0 = arith.constant 0 : i32
    return %arg0, %arg1, %c0_i32 : i32, i32, i32
  }
  func.func @transform_1(%arg0: i32, %arg1: i32) -> (i32, i32) {
    %c0_i32 = arith.constant 0 : i32
    return %arg0, %arg1 : i32, i32
  }
  func.func @transform_2(%arg0: i32, %arg1: i32) -> (i32, i32) {
    %c0_i32 = arith.constant 0 : i32
    %c0_i32_0 = arith.constant 0 : i32
    %c0_i32_1 = arith.constant 0 : i32
    return %c0_i32, %c0_i32_0 : i32, i32
  }
  func.func @transform_3(%arg0: i32, %arg1: i32) -> (i32, i32) {
    %c0_i32 = arith.constant 0 : i32
    %c0_i32_0 = arith.constant 0 : i32
    return %arg0, %c0_i32 : i32, i32
  }
}

</mosaic_0001>

<llo_original>
// kernel: tpu_custom_call.1
$region0: #{tpu_custom_call.1}
  #allocation0 [shape = 'u32[]', space=smem, size = 0x4, offset = 0x4, fixed_abs, tag = 'smem constant byte address 0x4 - core index']
  #allocation1 [shape = 'u32[144,128]{1,0:T(1,128)}', space=vmem, size = 0x12000, scoped, tag = 'internal scratch']
  #allocation2 [shape = 'f32[2,32]{1,0:T(2,128)}', space=vmem, size = 0x400, scoped, tag = 'scratch operand']
  #allocation3 [shape = 'f32[2,1]{1,0:T(2,128)}', space=vmem, size = 0x400, scoped, tag = 'scratch operand']
  %s0 = inlined_call_operand.hbm [shape: bf16[2,8,32], index: 0, kind: input, shape index: {}]
  %s1 = inlined_call_operand.hbm [shape: f32[2,8], index: 1, kind: input, shape index: {}]
  %s2 = inlined_call_operand.hbm [shape: bf16[32,32], index: 2, kind: input, shape index: {}]
  %s3 = inlined_call_operand.hbm [shape: bf16[2,32], index: 3, kind: output, shape index: {}]
  %s4 = sld [smem:[#allocation0]]
  $region42: #{tpu_custom_call.1} parent=0
    _
  %s6 = ssub.s32 1, %s4
  %s7 = scalar_select 0, %s6, %s4
  $region1: #{tpu_custom_call.1} parent=0
    #allocation4 [shape = 'u8[4096]{0}', space=vmem, size = 0x1000, scoped, tag = 'input window, operand 0, single buffered']
    #allocation5 [shape = 's32[1]{0}', space=sflag, size = 0x4, scoped, tag = 'scoped memory for tpu_custom_call.1']
    #allocation6 [shape = 's32[1]{0}', space=sflag, size = 0x4, scoped, tag = 'scoped memory for tpu_custom_call.1']
    #allocation7 [shape = 'u8[1024]{0}', space=vmem, size = 0x400, scoped, tag = 'input window, operand 1, single buffered']
    #allocation8 [shape = 's32[1]{0}', space=sflag, size = 0x4, scoped, tag = 'scoped memory for tpu_custom_call.1']
    #allocation9 [shape = 'u8[8192]{0}', space=vmem, size = 0x2000, scoped, tag = 'input window, operand 2, single buffered']
    #allocation10 [shape = 'u8[512]{0}', space=vmem, size = 0x400, scoped, tag = 'output window, operand 0, single buffered']
    %8 = vsyncpa [#allocation5], 0
    %9 = vsyncpa [#allocation8], 0
    %10 = vsyncpa [#allocation6], 0
    // Predicated region
    $region2: #{tpu_custom_call.1} parent=1 // pred_check
      _
    $region3: #{tpu_custom_call.1} parent=1 // pred_check_branch
      %12 = sbr.rel (0) target = $region5
    $region4: #{tpu_custom_call.1} parent=1 // pred_region
      %s14 = ssub.s32 128, 128
      %15 = vsyncadd [#allocation5], %s14
      %s16 = sshll.u32 [#allocation4], 4
      %s17 = int_to_ptr.vmem [resolvable:$true] %s16
      %22 = dma.hbm_to_vmem [thread:$0]  %s0, 128, %s17, [#allocation5], 64, 64, 4
    $region5: #{tpu_custom_call.1} parent=1 // pred_fallthru
      _
    // Predicated region
    $region6: #{tpu_custom_call.1} parent=1 // pred_check
      _
    $region7: #{tpu_custom_call.1} parent=1 // pred_check_branch
      %24 = sbr.rel (0) target = $region9
    $region8: #{tpu_custom_call.1} parent=1 // pred_region
      %s26 = ssub.s32 32, 32
      %27 = vsyncadd [#allocation8], %s26
      %s29 = sshll.u32 [#allocation7], 4
      %s30 = int_to_ptr.vmem [resolvable:$true] %s29
      %32 = dma.hbm_to_vmem [thread:$0]  %s1, 32, %s30, [#allocation8]
    $region9: #{tpu_custom_call.1} parent=1 // pred_fallthru
      _
    // Predicated region
    $region10: #{tpu_custom_call.1} parent=1 // pred_check
      _
    $region11: #{tpu_custom_call.1} parent=1 // pred_check_branch
      %34 = sbr.rel (0) target = $region13
    $region12: #{tpu_custom_call.1} parent=1 // pred_region
      %s36 = ssub.s32 256, 256
      %37 = vsyncadd [#allocation8], %s36
      %s38 = sshll.u32 [#allocation9], 4
      %s39 = int_to_ptr.vmem [resolvable:$true] %s38
      %44 = dma.hbm_to_vmem [thread:$0]  %s2, 256, %s39, [#allocation8], 64, 64, 4
    $region13: #{tpu_custom_call.1} parent=1 // pred_fallthru
      _
    // Predicated region
    $region14: #{tpu_custom_call.1} parent=1 // pred_check
      _
    $region15: #{tpu_custom_call.1} parent=1 // pred_check_branch
      %46 = sbr.rel (0) target = $region17
    $region16: #{tpu_custom_call.1} parent=1 // pred_region
      %47 = dma.done [#allocation5], 128
    $region17: #{tpu_custom_call.1} parent=1 // pred_fallthru
      _
    // Predicated region
    $region18: #{tpu_custom_call.1} parent=1 // pred_check
      _
    $region19: #{tpu_custom_call.1} parent=1 // pred_check_branch
      %49 = sbr.rel (0) target = $region21
    $region20: #{tpu_custom_call.1} parent=1 // pred_region
      %50 = dma.done [#allocation8], 32
    $region21: #{tpu_custom_call.1} parent=1 // pred_fallthru
      _
    // Predicated region
    $region22: #{tpu_custom_call.1} parent=1 // pred_check
      _
    $region23: #{tpu_custom_call.1} parent=1 // pred_check_branch
      %52 = sbr.rel (0) target = $region25
    $region24: #{tpu_custom_call.1} parent=1 // pred_region
      %53 = dma.done [#allocation8], 256
    $region25: #{tpu_custom_call.1} parent=1 // pred_fallthru
      _
    %p55 = scmp.eq.s32.totalorder 0, 0
    // Predicated region
    $region26: #{tpu_custom_call.1} parent=1 // pred_check
      %p56 = pneg %p55
    $region27: #{tpu_custom_call.1} parent=1 // pred_check_branch
      %58 = sbr.rel (%p56) target = $region29
    $region28: #{tpu_custom_call.1} parent=1 // pred_region
      %vm59 = vcmask 254976
      %60 = vst.msk [vmem:[#allocation2] sm:$0x3] %vm59, 0.0
      %vm61 = vcmask 1024
      %62 = vst.msk [vmem:[#allocation3] sm:$0x3] %vm61, 0.0
    $region29: #{tpu_custom_call.1} parent=1 // pred_fallthru
      _
    %v63 = vld [vmem:[#allocation4] sm:$0xf]
    %v64 = vld [vmem:[#allocation4 + $0x4] sm:$0xf]
    %v65 = vunpack.c.l.bf16 %v63
    %v66 = vunpack.c.l.bf16 %v64
    %v67 = vld [vmem:[#allocation7] sm:$0x3]
    %v68 = vld [vmem:[#allocation2] sm:$0x3]
    %v69 = vlaneseq
    %v70 = vshrl.u32 %v69, 7
    %v71 = vsub.s32 0, %v70
    %v72 = vrot.slane %v67, %v71
    %74 = vbcast.lane.b32.xlu0 %v72, 256
    %v75 = vpop.permute.xlu0 %74
    %v76 = vlaneseq
    %v77 = vshrl.u32 %v76, 7
    %v78 = vsub.s32 1, %v77
    %v79 = vrot.slane %v67, %v78
    %81 = vbcast.lane.b32.xlu0 %v79, 256
    %v82 = vpop.permute.xlu0 %81
    %v83 = vmul.f32 %v65, %v75
    %v84 = vmul.f32 %v66, %v82
    %vm85 = vcmask 261120
    %v86 = vsel %vm85, %v83, 0.0
    %v87 = vrot.slane %v86, 4
    %v88 = vadd.f32 %v86, %v87
    %v89 = vrot.slane %v88, 2
    %v90 = vadd.f32 %v88, %v89
    %v91 = vrot.slane %v90, 1
    %v92 = vadd.f32 %v90, %v91
    %v93 = vsel %vm85, %v84, 0.0
    %v94 = vrot.slane %v93, 4
    %v95 = vadd.f32 %v93, %v94
    %v96 = vrot.slane %v95, 2
    %v97 = vadd.f32 %v95, %v96
    %v98 = vrot.slane %v97, 1
    %v99 = vadd.f32 %v97, %v98
    %vm102 = vcmask 1041409
    %v103 = vsel %vm102, %v99, %v92
    %v105 = vadd.f32 %v68, %v103
    %vm106 = vcmask 254976
    %107 = vst.msk [vmem:[#allocation2] sm:$0x3] %vm106, %v105
    %v108 = vld [vmem:[#allocation3] sm:$0x3]
    %vm109 = vcmask 58368
    %v110 = vsel %vm109, %v67, 0.0
    %111 = vadd.xlane.f32.xlu0 %v110
    %v112 = vpop.xlane.xlu0 %111
    %v113 = vadd.f32 %v108, %v112
    %vm114 = vcmask 1024
    %115 = vst.msk [vmem:[#allocation3] sm:$0x3] %vm114, %v113
    // Predicated region
    $region30: #{tpu_custom_call.1} parent=1 // pred_check
      %p116 = pneg %p55
    $region31: #{tpu_custom_call.1} parent=1 // pred_check_branch
      %118 = sbr.rel (%p116) target = $region33
    $region32: #{tpu_custom_call.1} parent=1 // pred_region
      %v119 = vld [vmem:[#allocation3] sm:$0x3]
      %v120 = vmax.f32 %v119, 1.0
      %v121 = vld [vmem:[#allocation2] sm:$0x3]
      %123 = vset.pattern.permute.xlu0 0
      %124 = vperm.xlu0 %123, %v120
      %v125 = vpop.permute.xlu0 %124
      %v127 = vrcp.pop %v125
      %v128 = vmul.f32 %v121, %v127
      %v129 = vpack.c.bf16 %v128, %v128
      %v130 = vld [vmem:[#allocation9] sm:$0xf]
      %v131 = vld [vmem:[#allocation9 + $0x4] sm:$0xf]
      %v132 = vld [vmem:[#allocation9 + $0x8] sm:$0xf]
      %v133 = vld [vmem:[#allocation9 + $0xc] sm:$0xf]
      %v138 = vunpack.c.l.b16 %v130
      %v139 = vunpack.c.l.b16 %v131
      %v140 = vunpack.c.l.b16 %v132
      %v141 = vunpack.c.l.b16 %v133
      %v142 = vpack.c.b16 %v139, %v138
      %v143 = vpack.c.b16 %v141, %v140
      %v147 = vsel %vm85, %v129, 0
      %149 = vmatprep.subr.bf16.mxu0 0
      %150 = vmatpush1.bf16.msra.mxu0 0
      %151 = vmatprep.subr.bf16.mxu0 0
      %152 = vmatpush1.bf16.msra.mxu0 0
      %153 = vmatprep.subr.bf16.mxu0 0
      %154 = vmatpush1.bf16.msra.mxu0 0
      %155 = vmatprep.subr.bf16.mxu0 0
      %156 = vmatpush1.bf16.msra.mxu0 0
      %157 = vmatprep.subr.bf16.mxu0 0
      %158 = vmatpush1.bf16.msra.mxu0 0
      %159 = vmatprep.subr.bf16.mxu0 0
      %160 = vmatpush1.bf16.msra.mxu0 0
      %161 = vmatprep.subr.bf16.mxu0 0
      %162 = vmatpush1.bf16.msra.mxu0 %v143
      %163 = vmatprep.subr.bf16.mxu0 0
      %164 = vmatpush1.bf16.msra.mxu0 %v142
      %165 = vmatprep.subr.bf16.mxu0 0
      %166 = vmatpush2.bf16.msra.mxu0 0
      %167 = vmatprep.subr.bf16.mxu0 0
      %168 = vmatpush2.bf16.msra.mxu0 0
      %169 = vmatprep.subr.bf16.mxu0 0
      %170 = vmatpush2.bf16.msra.mxu0 0
      %171 = vmatprep.subr.bf16.mxu0 0
      %172 = vmatpush2.bf16.msra.mxu0 0
      %173 = vmatprep.subr.bf16.mxu0 0
      %174 = vmatpush2.bf16.msra.mxu0 0
      %175 = vmatprep.subr.bf16.mxu0 0
      %176 = vmatpush2.bf16.msra.mxu0 0
      %177 = vmatprep.subr.bf16.mxu0 0
      %178 = vmatpush2.bf16.msra.mxu0 0
      %179 = vmatprep.subr.bf16.mxu0 0
      %180 = vmatpush2.bf16.msra.mxu0 0
      %181 = vmatprep.mubr.bf16.mxu0 0
      %182 = vmatmul.mubr.bf16.gmra.mxu0 %v147
      %v183 = vpop.f32.mrf.mxu0
      %v184 = vadd.f32 0.0, %v183
      %v185 = vpop.f32.mrf.mxu0
      %v186 = vpop.f32.mrf.mxu0
      %v187 = vpop.f32.mrf.mxu0
      %188 = vdwg.mxu0
      %v189 = vmul.f32 %v184, %v184
      %v190 = vsel %vm106, %v189, 0.0
      %191 = vadd.xlane.f32.xlu0 %v190
      %v192 = vpop.xlane.xlu0 %191
      %v193 = vadd.f32 %v192, 1e-12
      %v194 = vrsqrt.pop %v193
      %v195 = vmul.f32 %v184, %v194
      %v196 = vpack.c.bf16 %v195, %v195
      %vm197 = vcmask 253952
      %198 = vst.msk [vmem:[#allocation10] sm:$0x1] %vm197, %v196
    $region33: #{tpu_custom_call.1} parent=1 // pred_fallthru
      _
    // Predicated region
    $region34: #{tpu_custom_call.1} parent=1 // pred_check
      _
    $region35: #{tpu_custom_call.1} parent=1 // pred_check_branch
      %200 = sbr.rel (0) target = $region37
    $region36: #{tpu_custom_call.1} parent=1 // pred_region
      %s202 = ssub.s32 16, 16
      %203 = vsyncadd [#allocation6], %s202
      %s205 = sshll.u32 [#allocation10], 4
      %s206 = int_to_ptr.vmem [resolvable:$true] %s205
      %208 = dma.vmem_to_hbm [thread:$0]  %s206, 16, %s3, [#allocation6]
    $region37: #{tpu_custom_call.1} parent=1 // pred_fallthru
      _
    // Predicated region
    $region38: #{tpu_custom_call.1} parent=1 // pred_check
      _
    $region39: #{tpu_custom_call.1} parent=1 // pred_check_branch
      %210 = sbr.rel (0) target = $region41
    $region40: #{tpu_custom_call.1} parent=1 // pred_region
      %211 = dma.done [#allocation6], 16
    $region41: #{tpu_custom_call.1} parent=1 // pred_fallthru
      _
    %212 = vsyncpa [#allocation5], 1
    %213 = vsyncpa [#allocation8], 1
    %214 = vsyncpa [#allocation6], 1

</llo_original>
